<compile_context>
chip_gen: v7x
topology: tpu7x:2x2x1
jax: 0.10.0
libtpu: 0.0.40
codegen_flags: <defaults>
</compile_context>

<pallas_src>
import math

import jax
import jax.numpy as jnp
from jax.experimental import pallas as pl
from jax.experimental.pallas import tpu as pltpu


def timestep_embedder_kernel(t_ref, freqs_ref, w1c_ref, w1s_ref, b1_ref,
                             w2_ref, b2_ref, o_ref):
    """Fused: sinusoidal embedding -> Linear -> SiLU -> Linear for one N-tile."""
    t_col = t_ref[...]                      # (tN, 1)
    freqs = freqs_ref[...]                  # (1, half)
    args = t_col * freqs                    # (tN, half), single broadcast

    cos_a = jnp.cos(args)
    sin_a = jnp.sin(args)

    # First linear without materializing concat([cos, sin], -1):
    #   emb @ W1 = cos @ W1[:half] + sin @ W1[half:]
    h = (jnp.dot(cos_a, w1c_ref[...], preferred_element_type=jnp.float32)
         + jnp.dot(sin_a, w1s_ref[...], preferred_element_type=jnp.float32)
         + b1_ref[...])                     # (tN, H)

    h = h * jax.lax.logistic(h)             # SiLU

    o_ref[...] = (jnp.dot(h, w2_ref[...], preferred_element_type=jnp.float32)
                  + b2_ref[...])            # (tN, H)


def timestep_embedder(t, w1, b1, w2, b2, *, frequency_embedding_size=256,
                      max_period=10000, max_tile_n=256):
    """t: (N,) float timesteps. Weights stored as (in, out). Returns (N, H) f32."""
    N = t.shape[0]
    F = frequency_embedding_size
    half = F // 2
    H = w1.shape[1]
    # TODO(synk): odd frequency_embedding_size (extra zero column) not supported in-kernel.
    assert F % 2 == 0, "frequency_embedding_size must be even"
    assert w1.shape[0] == F and w2.shape == (H, H)

    # Sinusoid frequencies (constant, computed once in the wrapper).
    freqs = jnp.exp(
        -math.log(max_period) * jnp.arange(half, dtype=jnp.float32) / half
    ).reshape(1, half)

    # Split W1 so the kernel never concatenates the embedding.
    w1_cos = w1[:half]                      # (half, H)
    w1_sin = w1[half:]                      # (half, H)

    # Batch tile: multiple of 8 sublanes, capped so VMEM stays comfortable.
    tn = min(max_tile_n, -(-N // 8) * 8)
    n_pad = -(-N // tn) * tn
    t_col = jnp.zeros((n_pad, 1), jnp.float32).at[:N, 0].set(
        t.astype(jnp.float32))

    out = pl.pallas_call(
        timestep_embedder_kernel,
        grid=(n_pad // tn,),
        in_specs=[
            pl.BlockSpec((tn, 1), lambda i: (i, 0)),      # t tile
            pl.BlockSpec((1, half), lambda i: (0, 0)),    # freqs
            pl.BlockSpec((half, H), lambda i: (0, 0)),    # W1 (cos rows)
            pl.BlockSpec((half, H), lambda i: (0, 0)),    # W1 (sin rows)
            pl.BlockSpec((1, H), lambda i: (0, 0)),       # b1
            pl.BlockSpec((H, H), lambda i: (0, 0)),       # W2
            pl.BlockSpec((1, H), lambda i: (0, 0)),       # b2
        ],
        out_specs=pl.BlockSpec((tn, H), lambda i: (i, 0)),
        out_shape=jax.ShapeDtypeStruct((n_pad, H), jnp.float32),
        compiler_params=pltpu.CompilerParams(
            dimension_semantics=("parallel",)),
    )(t_col, freqs, w1_cos, w1_sin, b1.reshape(1, H), w2, b2.reshape(1, H))
    return out[:N]


def timestep_embedder_ref(t, w1, b1, w2, b2, *, frequency_embedding_size=256,
                          max_period=10000):
    """Pure-JAX reference mirroring the PyTorch forward."""
    half = frequency_embedding_size // 2
    freqs = jnp.exp(
        -math.log(max_period) * jnp.arange(half, dtype=jnp.float32) / half)
    args = t.astype(jnp.float32)[:, None] * freqs[None]
    emb = jnp.concatenate([jnp.cos(args), jnp.sin(args)], axis=-1)
    h = emb @ w1 + b1
    h = jax.nn.silu(h)
    return h @ w2 + b2


if __name__ == "__main__":
    N, F, H = 8, 256, 32   # batch, frequency_embedding_size, hidden_size

    key = jax.random.PRNGKey(0)
    kt, k1, k2, k3, k4 = jax.random.split(key, 5)

    # Fractional timesteps in [0, 1000), as produced by diffusion schedules.
    t = jax.random.uniform(kt, (N,), dtype=jnp.float32, minval=0.0,
                           maxval=1000.0)

    # Deterministic synthetic MLP parameters (stored as (in, out) for x @ W).
    w1 = jax.random.normal(k1, (F, H), dtype=jnp.float32) * 0.05
    b1 = jax.random.normal(k2, (H,), dtype=jnp.float32) * 0.05
    w2 = jax.random.normal(k3, (H, H), dtype=jnp.float32) * 0.05
    b2 = jax.random.normal(k4, (H,), dtype=jnp.float32) * 0.05

    out = timestep_embedder(t, w1, b1, w2, b2, frequency_embedding_size=F)
    out = jax.block_until_ready(out)

    ref = timestep_embedder_ref(t, w1, b1, w2, b2, frequency_embedding_size=F)
    assert out.shape == (N, H), out.shape
    assert jnp.allclose(out, ref, atol=1e-4, rtol=1e-4), "mismatch vs reference"

    print("KERNEL_OK")
</pallas_src>

<mosaic_0001>
module attributes {stable_mosaic.version = 11 : i64} {
  func.func @timestep_embedder_kernel(%arg0: i32, %arg1: memref<8x1xf32, #tpu.memory_space<vmem>>, %arg2: memref<1x128xf32, #tpu.memory_space<vmem>>, %arg3: memref<128x32xf32, #tpu.memory_space<vmem>>, %arg4: memref<128x32xf32, #tpu.memory_space<vmem>>, %arg5: memref<1x32xf32, #tpu.memory_space<vmem>>, %arg6: memref<32x32xf32, #tpu.memory_space<vmem>>, %arg7: memref<1x32xf32, #tpu.memory_space<vmem>>, %arg8: memref<8x32xf32, #tpu.memory_space<vmem>>) attributes {dimension_semantics = [#tpu.dimension_semantics<parallel>], iteration_bounds = array<i64: 1>, scalar_prefetch = 0 : i64, scratch_operands = 0 : i64, tpu.core_type = #tpu.core_type<tc>, window_params = [{transform_indices = @transform_0, window_bounds = array<i64: 8, 1>}, {pipeline_mode = #tpu.pipeline_mode<synchronous>, transform_indices = @transform_1, window_bounds = array<i64: 1, 128>}, {pipeline_mode = #tpu.pipeline_mode<synchronous>, transform_indices = @transform_2, window_bounds = array<i64: 128, 32>}, {pipeline_mode = #tpu.pipeline_mode<synchronous>, transform_indices = @transform_3, window_bounds = array<i64: 128, 32>}, {pipeline_mode = #tpu.pipeline_mode<synchronous>, transform_indices = @transform_4, window_bounds = array<i64: 1, 32>}, {pipeline_mode = #tpu.pipeline_mode<synchronous>, transform_indices = @transform_5, window_bounds = array<i64: 32, 32>}, {pipeline_mode = #tpu.pipeline_mode<synchronous>, transform_indices = @transform_6, window_bounds = array<i64: 1, 32>}, {transform_indices = @transform_7, window_bounds = array<i64: 8, 32>}]} {
    %c0 = arith.constant 0 : index
    %c0_0 = arith.constant 0 : index
    %0 = vector.load %arg1[%c0, %c0_0] : memref<8x1xf32, #tpu.memory_space<vmem>>, vector<8x1xf32>
    %c0_1 = arith.constant 0 : index
    %c0_2 = arith.constant 0 : index
    %1 = vector.load %arg2[%c0_1, %c0_2] : memref<1x128xf32, #tpu.memory_space<vmem>>, vector<1x128xf32>
    %2 = vector.broadcast %0 : vector<8x1xf32> to vector<8x128xf32>
    %3 = vector.broadcast %1 : vector<1x128xf32> to vector<8x128xf32>
    %4 = arith.mulf %2, %3 : vector<8x128xf32>
    %5 = math.cos %4 : vector<8x128xf32>
    %6 = math.sin %4 : vector<8x128xf32>
    %c0_3 = arith.constant 0 : index
    %c0_4 = arith.constant 0 : index
    %7 = vector.load %arg3[%c0_3, %c0_4] : memref<128x32xf32, #tpu.memory_space<vmem>>, vector<128x32xf32>
    %cst = arith.constant dense<0.000000e+00> : vector<8x32xf32>
    %8 = tpu.matmul %5, %7, %cst {dimension_numbers = #tpu.dot_dimension_numbers<[1], [0], [0], [1], [0, 0, 1, 1], [], []>} : vector<8x128xf32>, vector<128x32xf32>, vector<8x32xf32> -> vector<8x32xf32>
    %c0_5 = arith.constant 0 : index
    %c0_6 = arith.constant 0 : index
    %9 = vector.load %arg4[%c0_5, %c0_6] : memref<128x32xf32, #tpu.memory_space<vmem>>, vector<128x32xf32>
    %cst_7 = arith.constant dense<0.000000e+00> : vector<8x32xf32>
    %10 = tpu.matmul %6, %9, %cst_7 {dimension_numbers = #tpu.dot_dimension_numbers<[1], [0], [0], [1], [0, 0, 1, 1], [], []>} : vector<8x128xf32>, vector<128x32xf32>, vector<8x32xf32> -> vector<8x32xf32>
    %11 = arith.addf %8, %10 : vector<8x32xf32>
    %c0_8 = arith.constant 0 : index
    %c0_9 = arith.constant 0 : index
    %12 = vector.load %arg5[%c0_8, %c0_9] : memref<1x32xf32, #tpu.memory_space<vmem>>, vector<1x32xf32>
    %13 = vector.broadcast %12 : vector<1x32xf32> to vector<8x32xf32>
    %14 = arith.addf %11, %13 : vector<8x32xf32>
    %15 = arith.negf %14 : vector<8x32xf32>
    %16 = math.exp %15 : vector<8x32xf32>
    %cst_10 = arith.constant 1.000000e+00 : f32
    %17 = vector.broadcast %cst_10 : f32 to vector<8x32xf32>
    %18 = arith.addf %17, %16 : vector<8x32xf32>
    %19 = arith.divf %17, %18 : vector<8x32xf32>
    %20 = arith.mulf %14, %19 : vector<8x32xf32>
    %c0_11 = arith.constant 0 : index
    %c0_12 = arith.constant 0 : index
    %21 = vector.load %arg6[%c0_11, %c0_12] : memref<32x32xf32, #tpu.memory_space<vmem>>, vector<32x32xf32>
    %cst_13 = arith.constant dense<0.000000e+00> : vector<8x32xf32>
    %22 = tpu.matmul %20, %21, %cst_13 {dimension_numbers = #tpu.dot_dimension_numbers<[1], [0], [0], [1], [0, 0, 1, 1], [], []>} : vector<8x32xf32>, vector<32x32xf32>, vector<8x32xf32> -> vector<8x32xf32>
    %c0_14 = arith.constant 0 : index
    %c0_15 = arith.constant 0 : index
    %23 = vector.load %arg7[%c0_14, %c0_15] : memref<1x32xf32, #tpu.memory_space<vmem>>, vector<1x32xf32>
    %24 = vector.broadcast %23 : vector<1x32xf32> to vector<8x32xf32>
    %25 = arith.addf %22, %24 : vector<8x32xf32>
    %c0_16 = arith.constant 0 : index
    %c0_17 = arith.constant 0 : index
    %26 = vector.load %arg8[%c0_16, %c0_17] : memref<8x32xf32, #tpu.memory_space<vmem>>, vector<8x32xf32>
    tpu.vector_store %arg8[%c0_16, %c0_17], %25 {strides = array<i32>} : memref<8x32xf32, #tpu.memory_space<vmem>>, vector<8x32xf32>,
    return
  }
  func.func @transform_0(%arg0: i32) -> (i32, i32) {
    %c0_i32 = arith.constant 0 : i32
    %c0_i32_0 = arith.constant 0 : i32
    return %arg0, %c0_i32 : i32, i32
  }
  func.func @transform_1(%arg0: i32) -> (i32, i32) {
    %c0_i32 = arith.constant 0 : i32
    %c0_i32_0 = arith.constant 0 : i32
    %c0_i32_1 = arith.constant 0 : i32
    return %c0_i32, %c0_i32_0 : i32, i32
  }
  func.func @transform_2(%arg0: i32) -> (i32, i32) {
    %c0_i32 = arith.constant 0 : i32
    %c0_i32_0 = arith.constant 0 : i32
    %c0_i32_1 = arith.constant 0 : i32
    return %c0_i32, %c0_i32_0 : i32, i32
  }
  func.func @transform_3(%arg0: i32) -> (i32, i32) {
    %c0_i32 = arith.constant 0 : i32
    %c0_i32_0 = arith.constant 0 : i32
    %c0_i32_1 = arith.constant 0 : i32
    return %c0_i32, %c0_i32_0 : i32, i32
  }
  func.func @transform_4(%arg0: i32) -> (i32, i32) {
    %c0_i32 = arith.constant 0 : i32
    %c0_i32_0 = arith.constant 0 : i32
    %c0_i32_1 = arith.constant 0 : i32
    return %c0_i32, %c0_i32_0 : i32, i32
  }
  func.func @transform_5(%arg0: i32) -> (i32, i32) {
    %c0_i32 = arith.constant 0 : i32
    %c0_i32_0 = arith.constant 0 : i32
    %c0_i32_1 = arith.constant 0 : i32
    return %c0_i32, %c0_i32_0 : i32, i32
  }
  func.func @transform_6(%arg0: i32) -> (i32, i32) {
    %c0_i32 = arith.constant 0 : i32
    %c0_i32_0 = arith.constant 0 : i32
    %c0_i32_1 = arith.constant 0 : i32
    return %c0_i32, %c0_i32_0 : i32, i32
  }
  func.func @transform_7(%arg0: i32) -> (i32, i32) {
    %c0_i32 = arith.constant 0 : i32
    %c0_i32_0 = arith.constant 0 : i32
    return %arg0, %c0_i32 : i32, i32
  }
}

</mosaic_0001>

<llo_original>
// kernel: tpu_custom_call.1
$region0: #{tpu_custom_call.1}
  #allocation0 [shape = 'u32[]', space=smem, size = 0x4, offset = 0x4, fixed_abs, tag = 'smem constant byte address 0x4 - core index']
  #allocation1 [shape = 'u32[144,128]{1,0:T(1,128)}', space=vmem, size = 0x12000, scoped, tag = 'internal scratch']
  %s0 = inlined_call_operand.vmem [shape: f32[8,1], index: 0, kind: input, shape index: {}]
  %s1 = inlined_call_operand.vmem [shape: f32[1,128], index: 1, kind: input, shape index: {}]
  %s2 = inlined_call_operand.vmem [shape: f32[128,32], index: 2, kind: input, shape index: {}]
  %s3 = inlined_call_operand.vmem [shape: f32[128,32], index: 3, kind: input, shape index: {}]
  %s4 = inlined_call_operand.vmem [shape: f32[1,32], index: 4, kind: input, shape index: {}]
  %s5 = inlined_call_operand.vmem [shape: f32[32,32], index: 5, kind: input, shape index: {}]
  %s6 = inlined_call_operand.vmem [shape: f32[1,32], index: 6, kind: input, shape index: {}]
  %s7 = inlined_call_operand.hbm [shape: f32[8,32], index: 7, kind: output, shape index: {}]
  %s8 = sld [smem:[#allocation0]]
  $region38: #{tpu_custom_call.1} parent=0
    _
  %s10 = ssub.s32 1, %s8
  %s11 = scalar_select 0, %s10, %s8
  $region1: #{tpu_custom_call.1} parent=0
    #allocation2 [shape = 'u8[4096]{0}', space=vmem, size = 0x1000, scoped, tag = 'output window, operand 0, single buffered']
    #allocation3 [shape = 's32[1]{0}', space=sflag, size = 0x4, scoped, tag = 'scoped memory for tpu_custom_call.1']
    %12 = vsyncpa [#allocation3], 0
    // Predicated region
    $region2: #{tpu_custom_call.1} parent=1 // pred_check
      _
    $region3: #{tpu_custom_call.1} parent=1 // pred_check_branch
      %14 = sbr.rel (0) target = $region5
    $region4: #{tpu_custom_call.1} parent=1 // pred_region
      _
    $region5: #{tpu_custom_call.1} parent=1 // pred_fallthru
      _
    // Predicated region
    $region6: #{tpu_custom_call.1} parent=1 // pred_check
      _
    $region7: #{tpu_custom_call.1} parent=1 // pred_check_branch
      %16 = sbr.rel (0) target = $region9
    $region8: #{tpu_custom_call.1} parent=1 // pred_region
      _
    $region9: #{tpu_custom_call.1} parent=1 // pred_fallthru
      _
    // Predicated region
    $region10: #{tpu_custom_call.1} parent=1 // pred_check
      _
    $region11: #{tpu_custom_call.1} parent=1 // pred_check_branch
      %18 = sbr.rel (0) target = $region13
    $region12: #{tpu_custom_call.1} parent=1 // pred_region
      _
    $region13: #{tpu_custom_call.1} parent=1 // pred_fallthru
      _
    // Predicated region
    $region14: #{tpu_custom_call.1} parent=1 // pred_check
      _
    $region15: #{tpu_custom_call.1} parent=1 // pred_check_branch
      %20 = sbr.rel (0) target = $region17
    $region16: #{tpu_custom_call.1} parent=1 // pred_region
      _
    $region17: #{tpu_custom_call.1} parent=1 // pred_fallthru
      _
    // Predicated region
    $region18: #{tpu_custom_call.1} parent=1 // pred_check
      _
    $region19: #{tpu_custom_call.1} parent=1 // pred_check_branch
      %22 = sbr.rel (0) target = $region21
    $region20: #{tpu_custom_call.1} parent=1 // pred_region
      _
    $region21: #{tpu_custom_call.1} parent=1 // pred_fallthru
      _
    // Predicated region
    $region22: #{tpu_custom_call.1} parent=1 // pred_check
      _
    $region23: #{tpu_custom_call.1} parent=1 // pred_check_branch
      %24 = sbr.rel (0) target = $region25
    $region24: #{tpu_custom_call.1} parent=1 // pred_region
      _
    $region25: #{tpu_custom_call.1} parent=1 // pred_fallthru
      _
    // Predicated region
    $region26: #{tpu_custom_call.1} parent=1 // pred_check
      _
    $region27: #{tpu_custom_call.1} parent=1 // pred_check_branch
      %26 = sbr.rel (0) target = $region29
    $region28: #{tpu_custom_call.1} parent=1 // pred_region
      _
    $region29: #{tpu_custom_call.1} parent=1 // pred_fallthru
      _
    %v27 = vld [vmem:[%s0] sm:$0xff]
    %v28 = vld [vmem:[%s1] sm:$0x1]
    %30 = vset.pattern.permute.xlu0 0
    %31 = vperm.xlu0 %30, %v27
    %v32 = vpop.permute.xlu0 %31
    %v35 = vlaneseq
    %v36 = vshrl.u32 %v35, 7
    %v37 = vsub.s32 0, %v36
    %v38 = vrot.slane %v28, %v37
    %v40 = vmul.f32 %v32, %v38
    %v41 = vand.u32 2147483647, %v40
    %vm42 = vcmp.le.f32.partialorder %v41, 0.7853982
    %vm43 = vcmp.lt.s32.totalorder %v40, 0
    %v44 = vand.u32 %v40, 2139095040
    %v45 = vshrl.u32 %v44, 23
    %v46 = vsub.s32 %v45, 127
    %v47 = vand.u32 2147483647, %v40
    %v48 = vand.u32 %v47, 8388607
    %v49 = vor.u32 %v48, 8388608
    %v50 = vsub.s32 0, %v49
    %v51 = vadd.s32 %v46, 1
    %vm52 = vcmp.gt.s32.totalorder %v51, 0
    %v53 = vsel %vm52, %v51, 0
    %v54 = vshrl.u32 %v53, 5
    %v55 = vand.u32 %v53, 31
    %v56 = vsub.s32 32, %v55
    %v57 = vshrl.u32 683565275, %v56
    %v58 = vshll.u32 683565275, %v55
    %v59 = vshrl.u32 2475754826, %v56
    %v60 = vor.u32 %v58, %v59
    %v61 = vshll.u32 2475754826, %v55
    %v62 = vshrl.u32 2131351028, %v56
    %v63 = vor.u32 %v61, %v62
    %v64 = vshll.u32 2131351028, %v55
    %v65 = vshrl.u32 2102212464, %v56
    %v66 = vor.u32 %v64, %v65
    %v67 = vshll.u32 2102212464, %v55
    %v68 = vshrl.u32 920167782, %v56
    %v69 = vor.u32 %v67, %v68
    %v70 = vshll.u32 920167782, %v55
    %v71 = vshrl.u32 1326507024, %v56
    %v72 = vor.u32 %v70, %v71
    %vm73 = vcmp.lt.s32.totalorder %v54, 1
    %vm74 = vcmp.lt.s32.totalorder %v54, 2
    %vm75 = vcmp.lt.s32.totalorder %v54, 3
    %vm76 = vcmp.lt.s32.totalorder %v54, 4
    %v77 = vsel %vm73, %v57, %v60
    %v78 = vsel %vm76, %v66, 2102212464
    %v79 = vsel %vm75, %v63, %v78
    %v80 = vsel %vm74, %v77, %v79
    %v81 = vsel %vm73, %v60, %v63
    %v82 = vsel %vm76, %v69, 920167782
    %v83 = vsel %vm75, %v66, %v82
    %v84 = vsel %vm74, %v81, %v83
    %v85 = vsel %vm73, %v63, %v66
    %v86 = vsel %vm76, %v72, 1326507024
    %v87 = vsel %vm75, %v69, %v86
    %v88 = vsel %vm74, %v85, %v87
    %v89 = vshll.u32 %v49, 8
    %v90 = vmul.u32.u64.compose %v89, %v88
    %v91 = vextract.low.u32 %v90
    %v92 = vextract.high.u32 %v90
    %v93 = vmul.u32.u64.compose %v89, %v84
    %v94 = vextract.low.u32 %v93
    %v95 = vextract.high.u32 %v93
    %v96 = vmul.u32 %v89, %v80
    %v97 = vadd.s32 %v92, %v94
    %vm98 = vc.u32 %v92, %v94
    %v99 = vadd.s32 %v95, 1
    %v100 = vsel %vm98, %v99, %v95
    %v101 = vadd.s32 %v96, %v100
    %v102 = vadd.s32 %v101, 536870912
    %v103 = vshrl.u32 %v102, 30
    %v104 = vshll.u32 %v103, 30
    %v105 = vsub.s32 %v101, %v104
    %vm106 = vcmp.lt.s32.totalorder %v105, 0
    %v107 = vsub.s32 0, %v105
    %v108 = vsel %vm106, %v107, %v105
    %v109 = vclz %v108
    %v110 = vsub.s32 %v109, 2
    %vm111 = vcmp.gt.s32.totalorder 0, %v110
    %v112 = vsel %vm111, 0, %v110
    %v113 = vsub.s32 32, %v112
    %v114 = vshll.u32 %v105, %v112
    %v115 = vshrl.u32 %v97, %v113
    %v116 = vor.u32 %v114, %v115
    %v117 = vsub.s32 4294967266, %v112
    %v118 = vadd.s32 %v117, 127
    %v119 = vshll.u32 %v118, 23
    %v120 = vor.u32 4788187, %v119
    %v121 = vand.u32 2147483647, %v120
    %v123 = vcvt.s32.f32 %v116
    %v124 = vmul.f32 %v123, %v121
    %v125 = vxor.u32 %v124, 2147483648
    %v126 = vsel %vm43, %v125, %v124
    %v127 = vsub.s32 4, %v103
    %v128 = vsel %vm43, %v127, %v103
    %v129 = vsel %vm42, %v40, %v126
    %v130 = vsel %vm42, 0, %v128
    %v131 = vcosq.f32.pop %v129
    %v132 = vsinq.f32.pop %v129
    %vm133 = vweird.f32 %v40
    %v134 = vand.u32 %v130, 3
    %vm135 = vcmp.lt.s32.totalorder %v134, 2
    %vm136 = vcmp.eq.s32.totalorder %v134, 0
    %v137 = vxor.u32 %v132, 2147483648
    %v138 = vsel %vm136, %v131, %v137
    %vm139 = vcmp.eq.s32.totalorder %v134, 2
    %v140 = vxor.u32 %v131, 2147483648
    %v141 = vsel %vm139, %v140, %v132
    %v142 = vsel %vm135, %v138, %v141
    %v143 = vsel %vm133, nan, %v142
    %v144 = vand.u32 2147483647, %v40
    %vm145 = vcmp.le.f32.partialorder %v144, 0.7853982
    %vm146 = vcmp.lt.s32.totalorder %v40, 0
    %v147 = vand.u32 %v40, 2139095040
    %v148 = vshrl.u32 %v147, 23
    %v149 = vsub.s32 %v148, 127
    %v150 = vand.u32 2147483647, %v40
    %v151 = vand.u32 %v150, 8388607
    %v152 = vor.u32 %v151, 8388608
    %v153 = vsub.s32 0, %v152
    %v154 = vadd.s32 %v149, 1
    %vm155 = vcmp.gt.s32.totalorder %v154, 0
    %v156 = vsel %vm155, %v154, 0
    %v157 = vshrl.u32 %v156, 5
    %v158 = vand.u32 %v156, 31
    %v159 = vsub.s32 32, %v158
    %v160 = vshrl.u32 683565275, %v159
    %v161 = vshll.u32 683565275, %v158
    %v162 = vshrl.u32 2475754826, %v159
    %v163 = vor.u32 %v161, %v162
    %v164 = vshll.u32 2475754826, %v158
    %v165 = vshrl.u32 2131351028, %v159
    %v166 = vor.u32 %v164, %v165
    %v167 = vshll.u32 2131351028, %v158
    %v168 = vshrl.u32 2102212464, %v159
    %v169 = vor.u32 %v167, %v168
    %v170 = vshll.u32 2102212464, %v158
    %v171 = vshrl.u32 920167782, %v159
    %v172 = vor.u32 %v170, %v171
    %v173 = vshll.u32 920167782, %v158
    %v174 = vshrl.u32 1326507024, %v159
    %v175 = vor.u32 %v173, %v174
    %vm176 = vcmp.lt.s32.totalorder %v157, 1
    %vm177 = vcmp.lt.s32.totalorder %v157, 2
    %vm178 = vcmp.lt.s32.totalorder %v157, 3
    %vm179 = vcmp.lt.s32.totalorder %v157, 4
    %v180 = vsel %vm176, %v160, %v163
    %v181 = vsel %vm179, %v169, 2102212464
    %v182 = vsel %vm178, %v166, %v181
    %v183 = vsel %vm177, %v180, %v182
    %v184 = vsel %vm176, %v163, %v166
    %v185 = vsel %vm179, %v172, 920167782
    %v186 = vsel %vm178, %v169, %v185
    %v187 = vsel %vm177, %v184, %v186
    %v188 = vsel %vm176, %v166, %v169
    %v189 = vsel %vm179, %v175, 1326507024
    %v190 = vsel %vm178, %v172, %v189
    %v191 = vsel %vm177, %v188, %v190
    %v192 = vshll.u32 %v152, 8
    %v193 = vmul.u32.u64.compose %v192, %v191
    %v194 = vextract.low.u32 %v193
    %v195 = vextract.high.u32 %v193
    %v196 = vmul.u32.u64.compose %v192, %v187
    %v197 = vextract.low.u32 %v196
    %v198 = vextract.high.u32 %v196
    %v199 = vmul.u32 %v192, %v183
    %v200 = vadd.s32 %v195, %v197
    %vm201 = vc.u32 %v195, %v197
    %v202 = vadd.s32 %v198, 1
    %v203 = vsel %vm201, %v202, %v198
    %v204 = vadd.s32 %v199, %v203
    %v205 = vadd.s32 %v204, 536870912
    %v206 = vshrl.u32 %v205, 30
    %v207 = vshll.u32 %v206, 30
    %v208 = vsub.s32 %v204, %v207
    %vm209 = vcmp.lt.s32.totalorder %v208, 0
    %v210 = vsub.s32 0, %v208
    %v211 = vsel %vm209, %v210, %v208
    %v212 = vclz %v211
    %v213 = vsub.s32 %v212, 2
    %vm214 = vcmp.gt.s32.totalorder 0, %v213
    %v215 = vsel %vm214, 0, %v213
    %v216 = vsub.s32 32, %v215
    %v217 = vshll.u32 %v208, %v215
    %v218 = vshrl.u32 %v200, %v216
    %v219 = vor.u32 %v217, %v218
    %v220 = vsub.s32 4294967266, %v215
    %v221 = vadd.s32 %v220, 127
    %v222 = vshll.u32 %v221, 23
    %v223 = vor.u32 4788187, %v222
    %v224 = vand.u32 2147483647, %v223
    %v226 = vcvt.s32.f32 %v219
    %v227 = vmul.f32 %v226, %v224
    %v228 = vxor.u32 %v227, 2147483648
    %v229 = vsel %vm146, %v228, %v227
    %v230 = vsub.s32 4, %v206
    %v231 = vsel %vm146, %v230, %v206
    %v232 = vsel %vm145, %v40, %v229
    %v233 = vsel %vm145, 0, %v231
    %v234 = vcosq.f32.pop %v232
    %v235 = vsinq.f32.pop %v232
    %vm236 = vweird.f32 %v40
    %v237 = vadd.s32 %v233, 3
    %v238 = vand.u32 %v237, 3
    %vm239 = vcmp.lt.s32.totalorder %v238, 2
    %vm240 = vcmp.eq.s32.totalorder %v238, 0
    %v241 = vxor.u32 %v235, 2147483648
    %v242 = vsel %vm240, %v234, %v241
    %vm243 = vcmp.eq.s32.totalorder %v238, 2
    %v244 = vxor.u32 %v234, 2147483648
    %v245 = vsel %vm243, %v244, %v235
    %v246 = vsel %vm239, %v242, %v245
    %v247 = vsel %vm236, nan, %v246
    %v248 = vld [vmem:[%s2] sm:$0xff]
    %v249 = vld [vmem:[%s2 + $0x8] sm:$0xff]
    %v250 = vld [vmem:[%s2 + $0x10] sm:$0xff]
    %v251 = vld [vmem:[%s2 + $0x18] sm:$0xff]
    %v252 = vld [vmem:[%s2 + $0x20] sm:$0xff]
    %v253 = vld [vmem:[%s2 + $0x28] sm:$0xff]
    %v254 = vld [vmem:[%s2 + $0x30] sm:$0xff]
    %v255 = vld [vmem:[%s2 + $0x38] sm:$0xff]
    %v256 = vld [vmem:[%s2 + $0x40] sm:$0xff]
    %v257 = vld [vmem:[%s2 + $0x48] sm:$0xff]
    %v258 = vld [vmem:[%s2 + $0x50] sm:$0xff]
    %v259 = vld [vmem:[%s2 + $0x58] sm:$0xff]
    %v260 = vld [vmem:[%s2 + $0x60] sm:$0xff]
    %v261 = vld [vmem:[%s2 + $0x68] sm:$0xff]
    %v262 = vld [vmem:[%s2 + $0x70] sm:$0xff]
    %v263 = vld [vmem:[%s2 + $0x78] sm:$0xff]
    %v264 = vld [vmem:[%s3] sm:$0xff]
    %v265 = vld [vmem:[%s3 + $0x8] sm:$0xff]
    %v266 = vld [vmem:[%s3 + $0x10] sm:$0xff]
    %v267 = vld [vmem:[%s3 + $0x18] sm:$0xff]
    %v268 = vld [vmem:[%s3 + $0x20] sm:$0xff]
    %v269 = vld [vmem:[%s3 + $0x28] sm:$0xff]
    %v270 = vld [vmem:[%s3 + $0x30] sm:$0xff]
    %v271 = vld [vmem:[%s3 + $0x38] sm:$0xff]
    %v272 = vld [vmem:[%s3 + $0x40] sm:$0xff]
    %v273 = vld [vmem:[%s3 + $0x48] sm:$0xff]
    %v274 = vld [vmem:[%s3 + $0x50] sm:$0xff]
    %v275 = vld [vmem:[%s3 + $0x58] sm:$0xff]
    %v276 = vld [vmem:[%s3 + $0x60] sm:$0xff]
    %v277 = vld [vmem:[%s3 + $0x68] sm:$0xff]
    %v278 = vld [vmem:[%s3 + $0x70] sm:$0xff]
    %v279 = vld [vmem:[%s3 + $0x78] sm:$0xff]
    %280 = vmatprep.subr.mxu0 0.0
    %281 = vmatpush1.msra.mxu0 %v264
    %282 = vmatprep.subr.mxu0 0.0
    %283 = vmatpush1.msra.mxu0 %v265
    %284 = vmatprep.subr.mxu0 0.0
    %285 = vmatpush1.msra.mxu0 %v266
    %286 = vmatprep.subr.mxu0 0.0
    %287 = vmatpush1.msra.mxu0 %v267
    %288 = vmatprep.subr.mxu0 0.0
    %289 = vmatpush1.msra.mxu0 %v268
    %290 = vmatprep.subr.mxu0 0.0
    %291 = vmatpush1.msra.mxu0 %v269
    %292 = vmatprep.subr.mxu0 0.0
    %293 = vmatpush1.msra.mxu0 %v270
    %294 = vmatprep.subr.mxu0 0.0
    %295 = vmatpush1.msra.mxu0 %v271
    %296 = vmatprep.subr.mxu0 0.0
    %297 = vmatpush1.msra.mxu0 %v272
    %298 = vmatprep.subr.mxu0 0.0
    %299 = vmatpush1.msra.mxu0 %v273
    %300 = vmatprep.subr.mxu0 0.0
    %301 = vmatpush1.msra.mxu0 %v274
    %302 = vmatprep.subr.mxu0 0.0
    %303 = vmatpush1.msra.mxu0 %v275
    %304 = vmatprep.subr.mxu0 0.0
    %305 = vmatpush1.msra.mxu0 %v276
    %306 = vmatprep.subr.mxu0 0.0
    %307 = vmatpush1.msra.mxu0 %v277
    %308 = vmatprep.subr.mxu0 0.0
    %309 = vmatpush1.msra.mxu0 %v278
    %310 = vmatprep.subr.mxu0 0.0
    %311 = vmatpush1.msra.mxu0 %v279
    %312 = vmatprep.subr.mxu0 0.0
    %313 = vmatpush1.msra.mxu0 0.0
    %314 = vmatprep.subr.mxu0 0.0
    %315 = vmatpush1.msra.mxu0 0.0
    %316 = vmatprep.subr.mxu0 0.0
    %317 = vmatpush1.msra.mxu0 0.0
    %318 = vmatprep.subr.mxu0 0.0
    %319 = vmatpush1.msra.mxu0 0.0
    %320 = vmatprep.subr.mxu0 0.0
    %321 = vmatpush1.msra.mxu0 0.0
    %322 = vmatprep.subr.mxu0 0.0
    %323 = vmatpush1.msra.mxu0 0.0
    %324 = vmatprep.subr.mxu0 0.0
    %325 = vmatpush1.msra.mxu0 0.0
    %326 = vmatprep.subr.mxu0 0.0
    %327 = vmatpush1.msra.mxu0 0.0
    %328 = vmatprep.subr.mxu0 0.0
    %329 = vmatpush1.msra.mxu0 0.0
    %330 = vmatprep.subr.mxu0 0.0
    %331 = vmatpush1.msra.mxu0 0.0
    %332 = vmatprep.subr.mxu0 0.0
    %333 = vmatpush1.msra.mxu0 0.0
    %334 = vmatprep.subr.mxu0 0.0
    %335 = vmatpush1.msra.mxu0 0.0
    %336 = vmatprep.subr.mxu0 0.0
    %337 = vmatpush1.msra.mxu0 0.0
    %338 = vmatprep.subr.mxu0 0.0
    %339 = vmatpush1.msra.mxu0 0.0
    %340 = vmatprep.subr.mxu0 0.0
    %341 = vmatpush1.msra.mxu0 0.0
    %342 = vmatprep.subr.mxu0 0.0
    %343 = vmatpush1.msra.mxu0 0.0
    %344 = vmatprep.mubr.f32.mxu0 0.0
    %345 = vmatmul.mubr.f32.gmra.mrb[0].mxu0 %v247
    %v346 = vpop.f32.mrb[0].mxu0
    %v347 = vadd.f32 0.0, %v346
    %v348 = vpop.f32.mrb[0].mxu0
    %349 = vdwg.mxu0
    %350 = vmatprep.subr.mxu0 0.0
    %351 = vmatpush1.msra.mxu0 %v248
    %352 = vmatprep.subr.mxu0 0.0
    %353 = vmatpush1.msra.mxu0 %v249
    %354 = vmatprep.subr.mxu0 0.0
    %355 = vmatpush1.msra.mxu0 %v250
    %356 = vmatprep.subr.mxu0 0.0
    %357 = vmatpush1.msra.mxu0 %v251
    %358 = vmatprep.subr.mxu0 0.0
    %359 = vmatpush1.msra.mxu0 %v252
    %360 = vmatprep.subr.mxu0 0.0
    %361 = vmatpush1.msra.mxu0 %v253
    %362 = vmatprep.subr.mxu0 0.0
    %363 = vmatpush1.msra.mxu0 %v254
    %364 = vmatprep.subr.mxu0 0.0
    %365 = vmatpush1.msra.mxu0 %v255
    %366 = vmatprep.subr.mxu0 0.0
    %367 = vmatpush1.msra.mxu0 %v256
    %368 = vmatprep.subr.mxu0 0.0
    %369 = vmatpush1.msra.mxu0 %v257
    %370 = vmatprep.subr.mxu0 0.0
    %371 = vmatpush1.msra.mxu0 %v258
    %372 = vmatprep.subr.mxu0 0.0
    %373 = vmatpush1.msra.mxu0 %v259
    %374 = vmatprep.subr.mxu0 0.0
    %375 = vmatpush1.msra.mxu0 %v260
    %376 = vmatprep.subr.mxu0 0.0
    %377 = vmatpush1.msra.mxu0 %v261
    %378 = vmatprep.subr.mxu0 0.0
    %379 = vmatpush1.msra.mxu0 %v262
    %380 = vmatprep.subr.mxu0 0.0
    %381 = vmatpush1.msra.mxu0 %v263
    %382 = vmatprep.subr.mxu0 0.0
    %383 = vmatpush1.msra.mxu0 0.0
    %384 = vmatprep.subr.mxu0 0.0
    %385 = vmatpush1.msra.mxu0 0.0
    %386 = vmatprep.subr.mxu0 0.0
    %387 = vmatpush1.msra.mxu0 0.0
    %388 = vmatprep.subr.mxu0 0.0
    %389 = vmatpush1.msra.mxu0 0.0
    %390 = vmatprep.subr.mxu0 0.0
    %391 = vmatpush1.msra.mxu0 0.0
    %392 = vmatprep.subr.mxu0 0.0
    %393 = vmatpush1.msra.mxu0 0.0
    %394 = vmatprep.subr.mxu0 0.0
    %395 = vmatpush1.msra.mxu0 0.0
    %396 = vmatprep.subr.mxu0 0.0
    %397 = vmatpush1.msra.mxu0 0.0
    %398 = vmatprep.subr.mxu0 0.0
    %399 = vmatpush1.msra.mxu0 0.0
    %400 = vmatprep.subr.mxu0 0.0
    %401 = vmatpush1.msra.mxu0 0.0
    %402 = vmatprep.subr.mxu0 0.0
    %403 = vmatpush1.msra.mxu0 0.0
    %404 = vmatprep.subr.mxu0 0.0
    %405 = vmatpush1.msra.mxu0 0.0
    %406 = vmatprep.subr.mxu0 0.0
    %407 = vmatpush1.msra.mxu0 0.0
    %408 = vmatprep.subr.mxu0 0.0
    %409 = vmatpush1.msra.mxu0 0.0
    %410 = vmatprep.subr.mxu0 0.0
    %411 = vmatpush1.msra.mxu0 0.0
    %412 = vmatprep.subr.mxu0 0.0
    %413 = vmatpush1.msra.mxu0 0.0
    %414 = vmatprep.mubr.f32.mxu0 0.0
    %415 = vmatmul.mubr.f32.gmra.mrb[0].mxu0 %v143
    %v416 = vpop.f32.mrb[0].mxu0
    %v417 = vadd.f32 %v347, %v416
    %v418 = vpop.f32.mrb[0].mxu0
    %419 = vdwg.mxu0
    %v420 = vld [vmem:[%s4] sm:$0x1]
    %v422 = vlaneseq
    %v423 = vshrl.u32 %v422, 7
    %v424 = vsub.s32 0, %v423
    %v425 = vrot.slane %v420, %v424
    %v427 = vadd.f32 %v417, %v425
    %v428 = vxor.u32 %v427, 2147483648
    %v429 = vmul.f32 %v428, 1.442695
    %v430 = vpow.pop %v429
    %v431 = vadd.f32 %v430, 1.0
    %v432 = vrcp.pop %v431
    %v433 = vmul.f32 1.0, %v432
    %v434 = vmul.f32 %v427, %v433
    %v435 = vld [vmem:[%s5] sm:$0xff]
    %v436 = vld [vmem:[%s5 + $0x8] sm:$0xff]
    %v437 = vld [vmem:[%s5 + $0x10] sm:$0xff]
    %v438 = vld [vmem:[%s5 + $0x18] sm:$0xff]
    %v439 = vld [vmem:[%s6] sm:$0x1]
    %v441 = vlaneseq
    %v442 = vshrl.u32 %v441, 7
    %v443 = vsub.s32 0, %v442
    %v444 = vrot.slane %v439, %v443
    %vm446 = vcmask 261120
    %v448 = vsel %vm446, %v434, 0
    %450 = vmatprep.subr.mxu0 0.0
    %451 = vmatpush1.msra.mxu0 %v435
    %452 = vmatprep.subr.mxu0 0.0
    %453 = vmatpush1.msra.mxu0 %v436
    %454 = vmatprep.subr.mxu0 0.0
    %455 = vmatpush1.msra.mxu0 %v437
    %456 = vmatprep.subr.mxu0 0.0
    %457 = vmatpush1.msra.mxu0 %v438
    %458 = vmatprep.subr.mxu0 0.0
    %459 = vmatpush1.msra.mxu0 0.0
    %460 = vmatprep.subr.mxu0 0.0
    %461 = vmatpush1.msra.mxu0 0.0
    %462 = vmatprep.subr.mxu0 0.0
    %463 = vmatpush1.msra.mxu0 0.0
    %464 = vmatprep.subr.mxu0 0.0
    %465 = vmatpush1.msra.mxu0 0.0
    %466 = vmatprep.subr.mxu0 0.0
    %467 = vmatpush1.msra.mxu0 0.0
    %468 = vmatprep.subr.mxu0 0.0
    %469 = vmatpush1.msra.mxu0 0.0
    %470 = vmatprep.subr.mxu0 0.0
    %471 = vmatpush1.msra.mxu0 0.0
    %472 = vmatprep.subr.mxu0 0.0
    %473 = vmatpush1.msra.mxu0 0.0
    %474 = vmatprep.subr.mxu0 0.0
    %475 = vmatpush1.msra.mxu0 0.0
    %476 = vmatprep.subr.mxu0 0.0
    %477 = vmatpush1.msra.mxu0 0.0
    %478 = vmatprep.subr.mxu0 0.0
    %479 = vmatpush1.msra.mxu0 0.0
    %480 = vmatprep.subr.mxu0 0.0
    %481 = vmatpush1.msra.mxu0 0.0
    %482 = vmatprep.subr.mxu0 0.0
    %483 = vmatpush1.msra.mxu0 0.0
    %484 = vmatprep.subr.mxu0 0.0
    %485 = vmatpush1.msra.mxu0 0.0
    %486 = vmatprep.subr.mxu0 0.0
    %487 = vmatpush1.msra.mxu0 0.0
    %488 = vmatprep.subr.mxu0 0.0
    %489 = vmatpush1.msra.mxu0 0.0
    %490 = vmatprep.subr.mxu0 0.0
    %491 = vmatpush1.msra.mxu0 0.0
    %492 = vmatprep.subr.mxu0 0.0
    %493 = vmatpush1.msra.mxu0 0.0
    %494 = vmatprep.subr.mxu0 0.0
    %495 = vmatpush1.msra.mxu0 0.0
    %496 = vmatprep.subr.mxu0 0.0
    %497 = vmatpush1.msra.mxu0 0.0
    %498 = vmatprep.subr.mxu0 0.0
    %499 = vmatpush1.msra.mxu0 0.0
    %500 = vmatprep.subr.mxu0 0.0
    %501 = vmatpush1.msra.mxu0 0.0
    %502 = vmatprep.subr.mxu0 0.0
    %503 = vmatpush1.msra.mxu0 0.0
    %504 = vmatprep.subr.mxu0 0.0
    %505 = vmatpush1.msra.mxu0 0.0
    %506 = vmatprep.subr.mxu0 0.0
    %507 = vmatpush1.msra.mxu0 0.0
    %508 = vmatprep.subr.mxu0 0.0
    %509 = vmatpush1.msra.mxu0 0.0
    %510 = vmatprep.subr.mxu0 0.0
    %511 = vmatpush1.msra.mxu0 0.0
    %512 = vmatprep.subr.mxu0 0.0
    %513 = vmatpush1.msra.mxu0 0.0
    %514 = vmatprep.mubr.f32.mxu0 0.0
    %515 = vmatmul.mubr.f32.gmra.mrb[0].mxu0 %v448
    %v516 = vpop.f32.mrb[0].mxu0
    %v517 = vadd.f32 %v444, %v516
    %v518 = vpop.f32.mrb[0].mxu0
    %519 = vdwg.mxu0
    %520 = vst.msk [vmem:[#allocation2] sm:$0xff] %vm446, %v517
    // Predicated region
    $region30: #{tpu_custom_call.1} parent=1 // pred_check
      _
    $region31: #{tpu_custom_call.1} parent=1 // pred_check_branch
      %522 = sbr.rel (0) target = $region33
    $region32: #{tpu_custom_call.1} parent=1 // pred_region
      %s524 = ssub.s32 128, 128
      %525 = vsyncadd [#allocation3], %s524
      %s527 = sshll.u32 [#allocation2], 4
      %s528 = int_to_ptr.vmem [resolvable:$true] %s527
      %530 = dma.vmem_to_hbm [thread:$0]  %s528, 128, %s7, [#allocation3]
    $region33: #{tpu_custom_call.1} parent=1 // pred_fallthru
      _
    // Predicated region
    $region34: #{tpu_custom_call.1} parent=1 // pred_check
      _
    $region35: #{tpu_custom_call.1} parent=1 // pred_check_branch
      %532 = sbr.rel (0) target = $region37
    $region36: #{tpu_custom_call.1} parent=1 // pred_region
      %533 = dma.done [#allocation3], 128
    $region37: #{tpu_custom_call.1} parent=1 // pred_fallthru
      _
    %534 = vsyncpa [#allocation3], 1

</llo_original>
